<compile_context>
chip_gen: v5e
topology: v5e:2x2
jax: 0.10.0
libtpu: 0.0.40
codegen_flags: <defaults>
</compile_context>

<pallas_src>
import functools

import jax
import jax.numpy as jnp
from jax.experimental import pallas as pl
from jax.experimental.pallas import tpu as pltpu


def _pool_rows_kernel(x_ref, o_ref, *, w_even, wo):
    """Row-local 2x2 / stride-2 max pool.

    x_ref: (R, 2*w_even)  each row = [image row 2i | image row 2i+1] of one
                          (face, channel, output-row i) triple.
    o_ref: (R, wo)        pooled output row.
    """
    x = x_ref[...]                                     # (R, 2*w_even)
    two_w = 2 * w_even

    # H direction: max(row 2i, row 2i+1). Circular roll by w_even swaps the two
    # halves, so lanes [0, w_even) hold max(x[q], x[q + w_even]).
    h = jnp.maximum(x, pltpu.roll(x, w_even, 1))
    h = h[:, :w_even]                                  # (R, w_even)

    # W direction: lane 2j now holds the max over the full 2x2 window.
    m = jnp.maximum(h, pltpu.roll(h, w_even - 1, 1))   # rolled[i] = h[i + 1]

    # Compact even lanes 2j -> j with ceil(log2(wo)) rounds of roll + select.
    # After rounds 0..k-1 the valid element j sits at lane 2j - (j mod 2^k);
    # round k pulls elements whose bit k of j is set left by 2^k.  The
    # destination lanes of round k are exactly {lane : ((lane >> k) & 3) == 1}.
    lane = jax.lax.broadcasted_iota(jnp.int32, m.shape, 1)
    k = 0
    while (1 << k) < wo:
        s = 1 << k
        shifted = pltpu.roll(m, w_even - s, 1)         # shifted[i] = m[i + s]
        mask = ((lane >> k) & 3) == 1
        m = jnp.where(mask, shifted, m)
        k += 1

    o_ref[...] = m[:, :wo]


def _choose_block_rows(total_rows, row_elems, itemsize):
    """Pick the per-step row tile (multiple of 8, ~1 MiB of padded input)."""
    lane = 128
    padded_row_bytes = ((row_elems + lane - 1) // lane) * lane * itemsize
    target = 1 << 20                                   # ~1 MiB of input / step
    r = max(8, (target // padded_row_bytes) // 8 * 8)
    r = min(r, total_rows)
    if r == total_rows and total_rows >= 16:
        # Split into >=2 grid steps so both v7x TensorCores get work.
        half = -(-total_rows // 2)
        r = min(total_rows, -(-half // 8) * 8)
    return r


@jax.jit
def cube_maxpool2x2(x):
    """2x2 stride-2 max pool over (K, C, H, W) input via a fused Pallas kernel."""
    K, C, H, W = x.shape
    Ho, Wo = H // 2, W // 2
    if K == 0 or Ho == 0 or Wo == 0:
        return jnp.zeros((K, C, Ho, Wo), dtype=x.dtype)

    He, We = 2 * Ho, 2 * Wo
    # Floor-crop (no-op when H, W even) then a zero-copy reshape packing each
    # pair of adjacent image rows into one kernel row.
    xc = x[:, :, :He, :We]
    rows = K * C * Ho
    x2 = xc.reshape(rows, 2 * We)

    R = _choose_block_rows(rows, 2 * We, jnp.dtype(x.dtype).itemsize)
    grid = (pl.cdiv(rows, R),)

    kernel = functools.partial(_pool_rows_kernel, w_even=We, wo=Wo)
    out2 = pl.pallas_call(
        kernel,
        out_shape=jax.ShapeDtypeStruct((rows, Wo), x.dtype),
        grid_spec=pltpu.PrefetchScalarGridSpec(
            num_scalar_prefetch=0,
            grid=grid,
            in_specs=[pl.BlockSpec((R, 2 * We), lambda i: (i, 0))],
            out_specs=pl.BlockSpec((R, Wo), lambda i: (i, 0)),
        ),
        compiler_params=pltpu.CompilerParams(
            dimension_semantics=("parallel",),
            vmem_limit_bytes=32 * 1024 * 1024,
        ),
    )(x2)

    return out2.reshape(K, C, Ho, Wo)


def sparse_cube_max_pool2d_forward(args, kernel_size=2, stride=2, padding=0):
    """Mirror of SparseCubeMaxPool2d.forward (default ctor)."""
    x, to_process, batch_size = args
    if padding != 0:
        # TODO(synk): SparseIdxCubePadImproved needs external cubemap sampling
        # helpers; only the default padding=0 path is implemented.
        raise NotImplementedError("padding != 0 path is not implemented")
    if kernel_size != 2 or stride != 2:
        raise NotImplementedError("only kernel_size=2, stride=2 is supported")
    pooled = cube_maxpool2x2(x)
    return (pooled, to_process, batch_size)


if __name__ == "__main__":
    key = jax.random.PRNGKey(0)

    batch_size = 2
    C, H, W = 4, 16, 16
    # to_process: subset of the 6*batch_size = 12 cube faces.
    to_process = jnp.array([0, 1, 3, 4, 6, 7, 9, 11], dtype=jnp.int32)
    K = to_process.shape[0]

    x = jax.random.normal(key, (K, C, H, W), dtype=jnp.float32)

    out, tp_out, bs_out = sparse_cube_max_pool2d_forward((x, to_process, batch_size))
    out = jax.block_until_ready(out)

    # Pure-JAX reference for correctness.
    ref = x.reshape(K, C, H // 2, 2, W // 2, 2).max(axis=(3, 5))
    assert out.shape == (K, C, H // 2, W // 2), out.shape
    assert out.dtype == x.dtype
    assert jnp.allclose(out, ref), "mismatch vs reference max-pool"
    assert bool(jnp.all(tp_out == to_process))
    assert bs_out == batch_size

    print("KERNEL_OK")
</pallas_src>

<mosaic_0001>
module attributes {stable_mosaic.version = 11 : i64} {
  func.func @_pool_rows_kernel(%arg0: i32, %arg1: memref<128x32xf32, #tpu.memory_space<vmem>>, %arg2: memref<128x8xf32, #tpu.memory_space<vmem>>) attributes {dimension_semantics = [#tpu.dimension_semantics<parallel>], iteration_bounds = array<i64: 2>, scalar_prefetch = 0 : i64, scratch_operands = 0 : i64, tpu.core_type = #tpu.core_type<tc>, window_params = [{transform_indices = @transform_0, window_bounds = array<i64: 128, 32>}, {transform_indices = @transform_1, window_bounds = array<i64: 128, 8>}]} {
    %c0 = arith.constant 0 : index
    %c0_0 = arith.constant 0 : index
    %0 = vector.load %arg1[%c0, %c0_0] : memref<128x32xf32, #tpu.memory_space<vmem>>, vector<128x32xf32>
    %c16_i32 = arith.constant 16 : i32
    %1 = tpu.dynamic_rotate %0 by %c16_i32 dim 1 : vector<128x32xf32>, i32 -> vector<128x32xf32>
    %2 = arith.maximumf %0, %1 : vector<128x32xf32>
    %3 = vector.extract_strided_slice %2 {offsets = [0, 0], sizes = [128, 16], strides = [1, 1]} : vector<128x32xf32> to vector<128x16xf32>
    %c15_i32 = arith.constant 15 : i32
    %4 = tpu.dynamic_rotate %3 by %c15_i32 dim 1 : vector<128x16xf32>, i32 -> vector<128x16xf32>
    %5 = arith.maximumf %3, %4 : vector<128x16xf32>
    %6 = tpu.iota {dimensions = array<i32: 1>} : vector<128x16xi32>
    %c15_i32_1 = arith.constant 15 : i32
    %7 = tpu.dynamic_rotate %5 by %c15_i32_1 dim 1 : vector<128x16xf32>, i32 -> vector<128x16xf32>
    %c0_i32 = arith.constant 0 : i32
    %8 = vector.broadcast %c0_i32 : i32 to vector<128x16xi32>
    %9 = arith.shrsi %6, %8 : vector<128x16xi32>
    %c3_i32 = arith.constant 3 : i32
    %10 = vector.broadcast %c3_i32 : i32 to vector<128x16xi32>
    %11 = arith.andi %9, %10 : vector<128x16xi32>
    %c1_i32 = arith.constant 1 : i32
    %12 = vector.broadcast %c1_i32 : i32 to vector<128x16xi32>
    %13 = arith.cmpi eq, %11, %12 : vector<128x16xi32>
    %14 = arith.select %13, %7, %5 : vector<128x16xi1>, vector<128x16xf32>
    %c14_i32 = arith.constant 14 : i32
    %15 = tpu.dynamic_rotate %14 by %c14_i32 dim 1 : vector<128x16xf32>, i32 -> vector<128x16xf32>
    %c1_i32_2 = arith.constant 1 : i32
    %16 = vector.broadcast %c1_i32_2 : i32 to vector<128x16xi32>
    %17 = arith.shrsi %6, %16 : vector<128x16xi32>
    %c3_i32_3 = arith.constant 3 : i32
    %18 = vector.broadcast %c3_i32_3 : i32 to vector<128x16xi32>
    %19 = arith.andi %17, %18 : vector<128x16xi32>
    %c1_i32_4 = arith.constant 1 : i32
    %20 = vector.broadcast %c1_i32_4 : i32 to vector<128x16xi32>
    %21 = arith.cmpi eq, %19, %20 : vector<128x16xi32>
    %22 = arith.select %21, %15, %14 : vector<128x16xi1>, vector<128x16xf32>
    %c12_i32 = arith.constant 12 : i32
    %23 = tpu.dynamic_rotate %22 by %c12_i32 dim 1 : vector<128x16xf32>, i32 -> vector<128x16xf32>
    %c2_i32 = arith.constant 2 : i32
    %24 = vector.broadcast %c2_i32 : i32 to vector<128x16xi32>
    %25 = arith.shrsi %6, %24 : vector<128x16xi32>
    %c3_i32_5 = arith.constant 3 : i32
    %26 = vector.broadcast %c3_i32_5 : i32 to vector<128x16xi32>
    %27 = arith.andi %25, %26 : vector<128x16xi32>
    %c1_i32_6 = arith.constant 1 : i32
    %28 = vector.broadcast %c1_i32_6 : i32 to vector<128x16xi32>
    %29 = arith.cmpi eq, %27, %28 : vector<128x16xi32>
    %30 = arith.select %29, %23, %22 : vector<128x16xi1>, vector<128x16xf32>
    %31 = vector.extract_strided_slice %30 {offsets = [0, 0], sizes = [128, 8], strides = [1, 1]} : vector<128x16xf32> to vector<128x8xf32>
    %c0_7 = arith.constant 0 : index
    %c0_8 = arith.constant 0 : index
    %32 = vector.load %arg2[%c0_7, %c0_8] : memref<128x8xf32, #tpu.memory_space<vmem>>, vector<128x8xf32>
    tpu.vector_store %arg2[%c0_7, %c0_8], %31 {strides = array<i32>} : memref<128x8xf32, #tpu.memory_space<vmem>>, vector<128x8xf32>,
    return
  }
  func.func @transform_0(%arg0: i32) -> (i32, i32) {
    %c0_i32 = arith.constant 0 : i32
    %c0_i32_0 = arith.constant 0 : i32
    return %arg0, %c0_i32 : i32, i32
  }
  func.func @transform_1(%arg0: i32) -> (i32, i32) {
    %c0_i32 = arith.constant 0 : i32
    %c0_i32_0 = arith.constant 0 : i32
    return %arg0, %c0_i32 : i32, i32
  }
}

</mosaic_0001>

<llo_original>
// kernel: cube_maxpool2x2.1
$region0: #{cube_maxpool2x2.1}
  #allocation0 [shape = 'u32[]', space=smem, size = 0x4, offset = 0x4, fixed_abs, tag = 'smem constant byte address 0x4 - core index']
  #allocation1 [shape = 'u32[72,128]{1,0:T(1,128)}', space=vmem, size = 0x9000, scoped, tag = 'internal scratch']
  %s0 = inlined_call_operand.vmem [shape: f32[256,32], index: 0, kind: input, shape index: {}]
  %s1 = inlined_call_operand.hbm [shape: f32[256,8], index: 1, kind: output, shape index: {}]
  %s2 = sld [smem:[#allocation0]]
  $region37: #{cube_maxpool2x2.1} parent=0
    _
  %s4 = ssub.s32 1, %s2
  %s5 = scalar_select 0, %s4, %s2
  $region1: #{cube_maxpool2x2.1} parent=0
    #allocation2 [shape = 'u8[131072]{0}', space=vmem, size = 0x20000, scoped, tag = 'output window, operand 0']
    #allocation3 [shape = 's32[2]{0}', space=sflag, size = 0x8, scoped, tag = 'scoped memory for cube_maxpool2x2.1']
    %6 = vsyncpa [#allocation3], 0
    %s7 = scalar_lea.sflag [#allocation3], 1
    %8 = vsyncpa %s7, 0
    loop: start=0, step=1, limit=4
    $region2: #{cube_maxpool2x2.1} parent=1 // loop_pre_header
      _
    $region3: #{cube_maxpool2x2.1} parent=1 // loop_header
      %s10 = sphi 0, %s14
      %p11 = scmp.ge.s32.totalorder %s10, 4
      %s20 = sphi 0, %s22
      %s23 = sphi 0, %s20
      %s24 = sphi 0, %s23
      %s40 = sphi 0, %s24
      %s46 = sphi 0, %s48
      %s49 = sphi 0, %s46
      %s50 = sphi 0, %s49
      %s66 = sphi 0, %s50
    $region4: #{cube_maxpool2x2.1} parent=1 // loop_header_branch
      %13 = sbr.rel (%p11) target = $region8
    $region5: #{cube_maxpool2x2.1} parent=1 // loop_body
      %s15 = ssub.s32 %s10, 1
      %s16 = ssub.s32 %s10, 2
      %s17 = sadd.s32 %s10, 1
      %s18 = ssub.s32 %s10, %s17
      %p19 = scmp.eq.s32.totalorder %s18, 0
      %s21 = sadd.s32 %s20, 1
      %s22 = scalar_select %p19, %s20, %s21
      %p25 = pneg %p19
      %p26 = scmp.eq.s32.totalorder %s10, 1
      %p27 = por %p25, %p26
      %p28 = scmp.ne.s32.totalorder %s20, %s23
      %p29 = scmp.eq.s32.totalorder %s10, 0
      %p30 = por %p28, %p29
      %p31 = scmp.ne.s32.totalorder %s20, %s23
      %p32 = scmp.eq.s32.totalorder %s15, 1
      %p33 = por %p31, %p32
      %p34 = scmp.ne.s32.totalorder %s23, %s24
      %p35 = scmp.eq.s32.totalorder %s15, 0
      %p36 = por %p34, %p35
      %p37 = scmp.ne.s32.totalorder %s23, %s24
      %p38 = scmp.eq.s32.totalorder %s16, 1
      %p39 = por %p37, %p38
      %p41 = scmp.ne.s32.totalorder %s24, %s40
      %p42 = scmp.eq.s32.totalorder %s16, 0
      %p43 = por %p41, %p42
      %s44 = ssub.s32 %s10, %s17
      %p45 = scmp.eq.s32.totalorder %s44, 0
      %s47 = sadd.s32 %s46, 1
      %s48 = scalar_select %p45, %s46, %s47
      %p51 = pneg %p45
      %p52 = scmp.eq.s32.totalorder %s10, 1
      %p53 = por %p51, %p52
      %p54 = scmp.ne.s32.totalorder %s46, %s49
      %p55 = scmp.eq.s32.totalorder %s10, 0
      %p56 = por %p54, %p55
      %p57 = scmp.ne.s32.totalorder %s46, %s49
      %p58 = scmp.eq.s32.totalorder %s15, 1
      %p59 = por %p57, %p58
      %p60 = scmp.ne.s32.totalorder %s49, %s50
      %p61 = scmp.eq.s32.totalorder %s15, 0
      %p62 = por %p60, %p61
      %p63 = scmp.ne.s32.totalorder %s49, %s50
      %p64 = scmp.eq.s32.totalorder %s16, 1
      %p65 = por %p63, %p64
      %p67 = scmp.ne.s32.totalorder %s50, %s66
      %p68 = scmp.eq.s32.totalorder %s16, 0
      %p69 = por %p67, %p68
      %p70 = scmp.le.s32.totalorder 1, %s10
      %p71 = scmp.lt.s32.totalorder %s10, 3
      %p72 = pnand %p70, %p71
      %p73 = pneg %p72
      // Predicated region
      $region9: #{cube_maxpool2x2.1} parent=5 // pred_check
        _
      $region10: #{cube_maxpool2x2.1} parent=5 // pred_check_branch
        %75 = sbr.rel (%p72) target = $region12
      $region11: #{cube_maxpool2x2.1} parent=5 // pred_region
        %s76 = ssub.s32 %s10, 1
      $region12: #{cube_maxpool2x2.1} parent=5 // pred_fallthru
        _
      %p77 = scmp.lt.s32.totalorder %s10, 2
      // Predicated region
      $region13: #{cube_maxpool2x2.1} parent=5 // pred_check
        %p78 = pneg %p77
      $region14: #{cube_maxpool2x2.1} parent=5 // pred_check_branch
        %80 = sbr.rel (%p78) target = $region16
      $region15: #{cube_maxpool2x2.1} parent=5 // pred_region
        // Predicated region
        $region17: #{cube_maxpool2x2.1} parent=15 // pred_check
          %p81 = pneg %p30
        $region18: #{cube_maxpool2x2.1} parent=15 // pred_check_branch
          %83 = sbr.rel (%p81) target = $region20
        $region19: #{cube_maxpool2x2.1} parent=15 // pred_region
          %s84 = smul.u32 16, %s10
          %p85 = scmp.lt.s32.totalorder %s84, 31
          %s86 = scalar_select %p85, %s84, 31
          %s87 = smul.addr %s86, 8
          %s88 = scalar_lea.vmem %s0, %s87
          %s89 = smul.u32 16, %s10
        $region20: #{cube_maxpool2x2.1} parent=15 // pred_fallthru
          _
      $region16: #{cube_maxpool2x2.1} parent=5 // pred_fallthru
        _
      %p90 = scmp.le.s32.totalorder 1, %s10
      %p91 = scmp.lt.s32.totalorder %s10, 3
      %p92 = pnand %p90, %p91
      %p93 = pneg %p92
      // Predicated region
      $region21: #{cube_maxpool2x2.1} parent=5 // pred_check
        _
      $region22: #{cube_maxpool2x2.1} parent=5 // pred_check_branch
        %95 = sbr.rel (%p92) target = $region24
      $region23: #{cube_maxpool2x2.1} parent=5 // pred_region
        %s96 = ssub.s32 %s10, 1
        %s97 = smul.u32 16, %s15
        %p98 = scmp.lt.s32.totalorder %s97, 31
        %s99 = scalar_select %p98, %s97, 31
        %s100 = smul.addr %s99, 8
        %s101 = scalar_lea.vmem %s0, %s100
        %p102 = pneg %p36
        %p103 = pneg %p33
        %p104 = pneg %p62
        %p105 = pneg %p59
        %s106 = sand.u32 %s49, 1
        %s107 = scalar_lea.sflag [#allocation3], %s106
        %s108 = sand.u32 %s49, 1
        %s109 = smul.addr %s108, 128
        %s110 = scalar_lea.vmem [#allocation2], %s109
        %s111 = smul.u32 16, %s15
        %p112 = scmp.lt.s32.totalorder %s111, 31
        %s113 = scalar_select %p112, %s111, 31
        %s114 = smul.addr %s113, 8
        %s115 = scalar_lea.vmem %s0, %s114
        %s116 = smul.u32 16, %s15
        %s117 = smul.u32 16, %s15
        %v118 = vld [vmem:[%s115] sm:$0xff]
        %v119 = vld [vmem:[%s115 + $0x8] sm:$0xff]
        %v120 = vld [vmem:[%s115 + $0x10] sm:$0xff]
        %v121 = vld [vmem:[%s115 + $0x18] sm:$0xff]
        %v122 = vld [vmem:[%s115 + $0x20] sm:$0xff]
        %v123 = vld [vmem:[%s115 + $0x28] sm:$0xff]
        %v124 = vld [vmem:[%s115 + $0x30] sm:$0xff]
        %v125 = vld [vmem:[%s115 + $0x38] sm:$0xff]
        %v126 = vld [vmem:[%s115 + $0x40] sm:$0xff]
        %v127 = vld [vmem:[%s115 + $0x48] sm:$0xff]
        %v128 = vld [vmem:[%s115 + $0x50] sm:$0xff]
        %v129 = vld [vmem:[%s115 + $0x58] sm:$0xff]
        %v130 = vld [vmem:[%s115 + $0x60] sm:$0xff]
        %v131 = vld [vmem:[%s115 + $0x68] sm:$0xff]
        %v132 = vld [vmem:[%s115 + $0x70] sm:$0xff]
        %v133 = vld [vmem:[%s115 + $0x78] sm:$0xff]
        %vm134 = vcmask 1047808
        %135 = vrot.lane.b32.xlu0 %v118, 32
        %v136 = vpop.permute.xlu0 %135
        %v137 = vsel %vm134, %v136, %v118
        %138 = vrot.lane.b32.xlu0 %v119, 32
        %v139 = vpop.permute.xlu0 %138
        %v140 = vsel %vm134, %v139, %v119
        %141 = vrot.lane.b32.xlu0 %v120, 32
        %v142 = vpop.permute.xlu0 %141
        %v143 = vsel %vm134, %v142, %v120
        %144 = vrot.lane.b32.xlu0 %v121, 32
        %v145 = vpop.permute.xlu0 %144
        %v146 = vsel %vm134, %v145, %v121
        %147 = vrot.lane.b32.xlu0 %v122, 32
        %v148 = vpop.permute.xlu0 %147
        %v149 = vsel %vm134, %v148, %v122
        %150 = vrot.lane.b32.xlu0 %v123, 32
        %v151 = vpop.permute.xlu0 %150
        %v152 = vsel %vm134, %v151, %v123
        %153 = vrot.lane.b32.xlu0 %v124, 32
        %v154 = vpop.permute.xlu0 %153
        %v155 = vsel %vm134, %v154, %v124
        %156 = vrot.lane.b32.xlu0 %v125, 32
        %v157 = vpop.permute.xlu0 %156
        %v158 = vsel %vm134, %v157, %v125
        %159 = vrot.lane.b32.xlu0 %v126, 32
        %v160 = vpop.permute.xlu0 %159
        %v161 = vsel %vm134, %v160, %v126
        %162 = vrot.lane.b32.xlu0 %v127, 32
        %v163 = vpop.permute.xlu0 %162
        %v164 = vsel %vm134, %v163, %v127
        %165 = vrot.lane.b32.xlu0 %v128, 32
        %v166 = vpop.permute.xlu0 %165
        %v167 = vsel %vm134, %v166, %v128
        %168 = vrot.lane.b32.xlu0 %v129, 32
        %v169 = vpop.permute.xlu0 %168
        %v170 = vsel %vm134, %v169, %v129
        %171 = vrot.lane.b32.xlu0 %v130, 32
        %v172 = vpop.permute.xlu0 %171
        %v173 = vsel %vm134, %v172, %v130
        %174 = vrot.lane.b32.xlu0 %v131, 32
        %v175 = vpop.permute.xlu0 %174
        %v176 = vsel %vm134, %v175, %v131
        %177 = vrot.lane.b32.xlu0 %v132, 32
        %v178 = vpop.permute.xlu0 %177
        %v179 = vsel %vm134, %v178, %v132
        %180 = vrot.lane.b32.xlu0 %v133, 32
        %v181 = vpop.permute.xlu0 %180
        %v182 = vsel %vm134, %v181, %v133
        %183 = vrot.lane.b32.xlu0 %v137, 32
        %v184 = vpop.permute.xlu0 %183
        %185 = vrot.lane.b32.xlu0 %v140, 32
        %v186 = vpop.permute.xlu0 %185
        %187 = vrot.lane.b32.xlu0 %v143, 32
        %v188 = vpop.permute.xlu0 %187
        %189 = vrot.lane.b32.xlu0 %v146, 32
        %v190 = vpop.permute.xlu0 %189
        %191 = vrot.lane.b32.xlu0 %v149, 32
        %v192 = vpop.permute.xlu0 %191
        %193 = vrot.lane.b32.xlu0 %v152, 32
        %v194 = vpop.permute.xlu0 %193
        %195 = vrot.lane.b32.xlu0 %v155, 32
        %v196 = vpop.permute.xlu0 %195
        %197 = vrot.lane.b32.xlu0 %v158, 32
        %v198 = vpop.permute.xlu0 %197
        %199 = vrot.lane.b32.xlu0 %v161, 32
        %v200 = vpop.permute.xlu0 %199
        %201 = vrot.lane.b32.xlu0 %v164, 32
        %v202 = vpop.permute.xlu0 %201
        %203 = vrot.lane.b32.xlu0 %v167, 32
        %v204 = vpop.permute.xlu0 %203
        %205 = vrot.lane.b32.xlu0 %v170, 32
        %v206 = vpop.permute.xlu0 %205
        %207 = vrot.lane.b32.xlu0 %v173, 32
        %v208 = vpop.permute.xlu0 %207
        %209 = vrot.lane.b32.xlu0 %v176, 32
        %v210 = vpop.permute.xlu0 %209
        %211 = vrot.lane.b32.xlu0 %v179, 32
        %v212 = vpop.permute.xlu0 %211
        %213 = vrot.lane.b32.xlu0 %v182, 32
        %v214 = vpop.permute.xlu0 %213
        %v215 = vsel %vm134, %v184, %v118
        %v216 = vsel %vm134, %v186, %v119
        %v217 = vsel %vm134, %v188, %v120
        %v218 = vsel %vm134, %v190, %v121
        %v219 = vsel %vm134, %v192, %v122
        %v220 = vsel %vm134, %v194, %v123
        %v221 = vsel %vm134, %v196, %v124
        %v222 = vsel %vm134, %v198, %v125
        %v223 = vsel %vm134, %v200, %v126
        %v224 = vsel %vm134, %v202, %v127
        %v225 = vsel %vm134, %v204, %v128
        %v226 = vsel %vm134, %v206, %v129
        %v227 = vsel %vm134, %v208, %v130
        %v228 = vsel %vm134, %v210, %v131
        %v229 = vsel %vm134, %v212, %v132
        %v230 = vsel %vm134, %v214, %v133
        %247 = vrot.lane.b32.xlu0 %v215, 112
        %v248 = vpop.permute.xlu0 %247
        %249 = vrot.lane.b32.xlu0 %v216, 112
        %v250 = vpop.permute.xlu0 %249
        %251 = vrot.lane.b32.xlu0 %v217, 112
        %v252 = vpop.permute.xlu0 %251
        %253 = vrot.lane.b32.xlu0 %v218, 112
        %v254 = vpop.permute.xlu0 %253
        %255 = vrot.lane.b32.xlu0 %v219, 112
        %v256 = vpop.permute.xlu0 %255
        %257 = vrot.lane.b32.xlu0 %v220, 112
        %v258 = vpop.permute.xlu0 %257
        %259 = vrot.lane.b32.xlu0 %v221, 112
        %v260 = vpop.permute.xlu0 %259
        %261 = vrot.lane.b32.xlu0 %v222, 112
        %v262 = vpop.permute.xlu0 %261
        %263 = vrot.lane.b32.xlu0 %v223, 112
        %v264 = vpop.permute.xlu0 %263
        %265 = vrot.lane.b32.xlu0 %v224, 112
        %v266 = vpop.permute.xlu0 %265
        %267 = vrot.lane.b32.xlu0 %v225, 112
        %v268 = vpop.permute.xlu0 %267
        %269 = vrot.lane.b32.xlu0 %v226, 112
        %v270 = vpop.permute.xlu0 %269
        %271 = vrot.lane.b32.xlu0 %v227, 112
        %v272 = vpop.permute.xlu0 %271
        %273 = vrot.lane.b32.xlu0 %v228, 112
        %v274 = vpop.permute.xlu0 %273
        %275 = vrot.lane.b32.xlu0 %v229, 112
        %v276 = vpop.permute.xlu0 %275
        %277 = vrot.lane.b32.xlu0 %v230, 112
        %v278 = vpop.permute.xlu0 %277
        %v295 = vmax.f32 %v118, %v248
        %v296 = vmax.f32 %v119, %v250
        %v297 = vmax.f32 %v120, %v252
        %v298 = vmax.f32 %v121, %v254
        %v299 = vmax.f32 %v122, %v256
        %v300 = vmax.f32 %v123, %v258
        %v301 = vmax.f32 %v124, %v260
        %v302 = vmax.f32 %v125, %v262
        %v303 = vmax.f32 %v126, %v264
        %v304 = vmax.f32 %v127, %v266
        %v305 = vmax.f32 %v128, %v268
        %v306 = vmax.f32 %v129, %v270
        %v307 = vmax.f32 %v130, %v272
        %v308 = vmax.f32 %v131, %v274
        %v309 = vmax.f32 %v132, %v276
        %v310 = vmax.f32 %v133, %v278
        %vm311 = vcmask 1047680
        %312 = vrot.lane.b32.xlu0 %v295, 16
        %v313 = vpop.permute.xlu0 %312
        %v314 = vsel %vm311, %v313, %v295
        %315 = vrot.lane.b32.xlu0 %v296, 16
        %v316 = vpop.permute.xlu0 %315
        %v317 = vsel %vm311, %v316, %v296
        %318 = vrot.lane.b32.xlu0 %v297, 16
        %v319 = vpop.permute.xlu0 %318
        %v320 = vsel %vm311, %v319, %v297
        %321 = vrot.lane.b32.xlu0 %v298, 16
        %v322 = vpop.permute.xlu0 %321
        %v323 = vsel %vm311, %v322, %v298
        %324 = vrot.lane.b32.xlu0 %v299, 16
        %v325 = vpop.permute.xlu0 %324
        %v326 = vsel %vm311, %v325, %v299
        %327 = vrot.lane.b32.xlu0 %v300, 16
        %v328 = vpop.permute.xlu0 %327
        %v329 = vsel %vm311, %v328, %v300
        %330 = vrot.lane.b32.xlu0 %v301, 16
        %v331 = vpop.permute.xlu0 %330
        %v332 = vsel %vm311, %v331, %v301
        %333 = vrot.lane.b32.xlu0 %v302, 16
        %v334 = vpop.permute.xlu0 %333
        %v335 = vsel %vm311, %v334, %v302
        %336 = vrot.lane.b32.xlu0 %v303, 16
        %v337 = vpop.permute.xlu0 %336
        %v338 = vsel %vm311, %v337, %v303
        %339 = vrot.lane.b32.xlu0 %v304, 16
        %v340 = vpop.permute.xlu0 %339
        %v341 = vsel %vm311, %v340, %v304
        %342 = vrot.lane.b32.xlu0 %v305, 16
        %v343 = vpop.permute.xlu0 %342
        %v344 = vsel %vm311, %v343, %v305
        %345 = vrot.lane.b32.xlu0 %v306, 16
        %v346 = vpop.permute.xlu0 %345
        %v347 = vsel %vm311, %v346, %v306
        %348 = vrot.lane.b32.xlu0 %v307, 16
        %v349 = vpop.permute.xlu0 %348
        %v350 = vsel %vm311, %v349, %v307
        %351 = vrot.lane.b32.xlu0 %v308, 16
        %v352 = vpop.permute.xlu0 %351
        %v353 = vsel %vm311, %v352, %v308
        %354 = vrot.lane.b32.xlu0 %v309, 16
        %v355 = vpop.permute.xlu0 %354
        %v356 = vsel %vm311, %v355, %v309
        %357 = vrot.lane.b32.xlu0 %v310, 16
        %v358 = vpop.permute.xlu0 %357
        %v359 = vsel %vm311, %v358, %v310
        %360 = vrot.lane.b32.xlu0 %v314, 16
        %v361 = vpop.permute.xlu0 %360
        %362 = vrot.lane.b32.xlu0 %v317, 16
        %v363 = vpop.permute.xlu0 %362
        %364 = vrot.lane.b32.xlu0 %v320, 16
        %v365 = vpop.permute.xlu0 %364
        %366 = vrot.lane.b32.xlu0 %v323, 16
        %v367 = vpop.permute.xlu0 %366
        %368 = vrot.lane.b32.xlu0 %v326, 16
        %v369 = vpop.permute.xlu0 %368
        %370 = vrot.lane.b32.xlu0 %v329, 16
        %v371 = vpop.permute.xlu0 %370
        %372 = vrot.lane.b32.xlu0 %v332, 16
        %v373 = vpop.permute.xlu0 %372
        %374 = vrot.lane.b32.xlu0 %v335, 16
        %v375 = vpop.permute.xlu0 %374
        %376 = vrot.lane.b32.xlu0 %v338, 16
        %v377 = vpop.permute.xlu0 %376
        %378 = vrot.lane.b32.xlu0 %v341, 16
        %v379 = vpop.permute.xlu0 %378
        %380 = vrot.lane.b32.xlu0 %v344, 16
        %v381 = vpop.permute.xlu0 %380
        %382 = vrot.lane.b32.xlu0 %v347, 16
        %v383 = vpop.permute.xlu0 %382
        %384 = vrot.lane.b32.xlu0 %v350, 16
        %v385 = vpop.permute.xlu0 %384
        %386 = vrot.lane.b32.xlu0 %v353, 16
        %v387 = vpop.permute.xlu0 %386
        %388 = vrot.lane.b32.xlu0 %v356, 16
        %v389 = vpop.permute.xlu0 %388
        %390 = vrot.lane.b32.xlu0 %v359, 16
        %v391 = vpop.permute.xlu0 %390
        %v392 = vsel %vm311, %v361, %v295
        %v393 = vsel %vm311, %v363, %v296
        %v394 = vsel %vm311, %v365, %v297
        %v395 = vsel %vm311, %v367, %v298
        %v396 = vsel %vm311, %v369, %v299
        %v397 = vsel %vm311, %v371, %v300
        %v398 = vsel %vm311, %v373, %v301
        %v399 = vsel %vm311, %v375, %v302
        %v400 = vsel %vm311, %v377, %v303
        %v401 = vsel %vm311, %v379, %v304
        %v402 = vsel %vm311, %v381, %v305
        %v403 = vsel %vm311, %v383, %v306
        %v404 = vsel %vm311, %v385, %v307
        %v405 = vsel %vm311, %v387, %v308
        %v406 = vsel %vm311, %v389, %v309
        %v407 = vsel %vm311, %v391, %v310
        %424 = vrot.lane.b32.xlu0 %v392, 127
        %v425 = vpop.permute.xlu0 %424
        %426 = vrot.lane.b32.xlu0 %v393, 127
        %v427 = vpop.permute.xlu0 %426
        %428 = vrot.lane.b32.xlu0 %v394, 127
        %v429 = vpop.permute.xlu0 %428
        %430 = vrot.lane.b32.xlu0 %v395, 127
        %v431 = vpop.permute.xlu0 %430
        %432 = vrot.lane.b32.xlu0 %v396, 127
        %v433 = vpop.permute.xlu0 %432
        %434 = vrot.lane.b32.xlu0 %v397, 127
        %v435 = vpop.permute.xlu0 %434
        %436 = vrot.lane.b32.xlu0 %v398, 127
        %v437 = vpop.permute.xlu0 %436
        %438 = vrot.lane.b32.xlu0 %v399, 127
        %v439 = vpop.permute.xlu0 %438
        %440 = vrot.lane.b32.xlu0 %v400, 127
        %v441 = vpop.permute.xlu0 %440
        %442 = vrot.lane.b32.xlu0 %v401, 127
        %v443 = vpop.permute.xlu0 %442
        %444 = vrot.lane.b32.xlu0 %v402, 127
        %v445 = vpop.permute.xlu0 %444
        %446 = vrot.lane.b32.xlu0 %v403, 127
        %v447 = vpop.permute.xlu0 %446
        %448 = vrot.lane.b32.xlu0 %v404, 127
        %v449 = vpop.permute.xlu0 %448
        %450 = vrot.lane.b32.xlu0 %v405, 127
        %v451 = vpop.permute.xlu0 %450
        %452 = vrot.lane.b32.xlu0 %v406, 127
        %v453 = vpop.permute.xlu0 %452
        %454 = vrot.lane.b32.xlu0 %v407, 127
        %v455 = vpop.permute.xlu0 %454
        %v472 = vmax.f32 %v295, %v425
        %v473 = vmax.f32 %v296, %v427
        %v474 = vmax.f32 %v297, %v429
        %v475 = vmax.f32 %v298, %v431
        %v476 = vmax.f32 %v299, %v433
        %v477 = vmax.f32 %v300, %v435
        %v478 = vmax.f32 %v301, %v437
        %v479 = vmax.f32 %v302, %v439
        %v480 = vmax.f32 %v303, %v441
        %v481 = vmax.f32 %v304, %v443
        %v482 = vmax.f32 %v305, %v445
        %v483 = vmax.f32 %v306, %v447
        %v484 = vmax.f32 %v307, %v449
        %v485 = vmax.f32 %v308, %v451
        %v486 = vmax.f32 %v309, %v453
        %v487 = vmax.f32 %v310, %v455
        %v488 = vlaneseq
        %v489 = vand.u32 %v488, 127
        %490 = vrot.lane.b32.xlu0 %v472, 16
        %v491 = vpop.permute.xlu0 %490
        %v492 = vsel %vm311, %v491, %v472
        %493 = vrot.lane.b32.xlu0 %v473, 16
        %v494 = vpop.permute.xlu0 %493
        %v495 = vsel %vm311, %v494, %v473
        %496 = vrot.lane.b32.xlu0 %v474, 16
        %v497 = vpop.permute.xlu0 %496
        %v498 = vsel %vm311, %v497, %v474
        %499 = vrot.lane.b32.xlu0 %v475, 16
        %v500 = vpop.permute.xlu0 %499
        %v501 = vsel %vm311, %v500, %v475
        %502 = vrot.lane.b32.xlu0 %v476, 16
        %v503 = vpop.permute.xlu0 %502
        %v504 = vsel %vm311, %v503, %v476
        %505 = vrot.lane.b32.xlu0 %v477, 16
        %v506 = vpop.permute.xlu0 %505
        %v507 = vsel %vm311, %v506, %v477
        %508 = vrot.lane.b32.xlu0 %v478, 16
        %v509 = vpop.permute.xlu0 %508
        %v510 = vsel %vm311, %v509, %v478
        %511 = vrot.lane.b32.xlu0 %v479, 16
        %v512 = vpop.permute.xlu0 %511
        %v513 = vsel %vm311, %v512, %v479
        %514 = vrot.lane.b32.xlu0 %v480, 16
        %v515 = vpop.permute.xlu0 %514
        %v516 = vsel %vm311, %v515, %v480
        %517 = vrot.lane.b32.xlu0 %v481, 16
        %v518 = vpop.permute.xlu0 %517
        %v519 = vsel %vm311, %v518, %v481
        %520 = vrot.lane.b32.xlu0 %v482, 16
        %v521 = vpop.permute.xlu0 %520
        %v522 = vsel %vm311, %v521, %v482
        %523 = vrot.lane.b32.xlu0 %v483, 16
        %v524 = vpop.permute.xlu0 %523
        %v525 = vsel %vm311, %v524, %v483
        %526 = vrot.lane.b32.xlu0 %v484, 16
        %v527 = vpop.permute.xlu0 %526
        %v528 = vsel %vm311, %v527, %v484
        %529 = vrot.lane.b32.xlu0 %v485, 16
        %v530 = vpop.permute.xlu0 %529
        %v531 = vsel %vm311, %v530, %v485
        %532 = vrot.lane.b32.xlu0 %v486, 16
        %v533 = vpop.permute.xlu0 %532
        %v534 = vsel %vm311, %v533, %v486
        %535 = vrot.lane.b32.xlu0 %v487, 16
        %v536 = vpop.permute.xlu0 %535
        %v537 = vsel %vm311, %v536, %v487
        %538 = vrot.lane.b32.xlu0 %v492, 16
        %v539 = vpop.permute.xlu0 %538
        %540 = vrot.lane.b32.xlu0 %v495, 16
        %v541 = vpop.permute.xlu0 %540
        %542 = vrot.lane.b32.xlu0 %v498, 16
        %v543 = vpop.permute.xlu0 %542
        %544 = vrot.lane.b32.xlu0 %v501, 16
        %v545 = vpop.permute.xlu0 %544
        %546 = vrot.lane.b32.xlu0 %v504, 16
        %v547 = vpop.permute.xlu0 %546
        %548 = vrot.lane.b32.xlu0 %v507, 16
        %v549 = vpop.permute.xlu0 %548
        %550 = vrot.lane.b32.xlu0 %v510, 16
        %v551 = vpop.permute.xlu0 %550
        %552 = vrot.lane.b32.xlu0 %v513, 16
        %v553 = vpop.permute.xlu0 %552
        %554 = vrot.lane.b32.xlu0 %v516, 16
        %v555 = vpop.permute.xlu0 %554
        %556 = vrot.lane.b32.xlu0 %v519, 16
        %v557 = vpop.permute.xlu0 %556
        %558 = vrot.lane.b32.xlu0 %v522, 16
        %v559 = vpop.permute.xlu0 %558
        %560 = vrot.lane.b32.xlu0 %v525, 16
        %v561 = vpop.permute.xlu0 %560
        %562 = vrot.lane.b32.xlu0 %v528, 16
        %v563 = vpop.permute.xlu0 %562
        %564 = vrot.lane.b32.xlu0 %v531, 16
        %v565 = vpop.permute.xlu0 %564
        %566 = vrot.lane.b32.xlu0 %v534, 16
        %v567 = vpop.permute.xlu0 %566
        %568 = vrot.lane.b32.xlu0 %v537, 16
        %v569 = vpop.permute.xlu0 %568
        %v570 = vsel %vm311, %v539, %v472
        %v571 = vsel %vm311, %v541, %v473
        %v572 = vsel %vm311, %v543, %v474
        %v573 = vsel %vm311, %v545, %v475
        %v574 = vsel %vm311, %v547, %v476
        %v575 = vsel %vm311, %v549, %v477
        %v576 = vsel %vm311, %v551, %v478
        %v577 = vsel %vm311, %v553, %v479
        %v578 = vsel %vm311, %v555, %v480
        %v579 = vsel %vm311, %v557, %v481
        %v580 = vsel %vm311, %v559, %v482
        %v581 = vsel %vm311, %v561, %v483
        %v582 = vsel %vm311, %v563, %v484
        %v583 = vsel %vm311, %v565, %v485
        %v584 = vsel %vm311, %v567, %v486
        %v585 = vsel %vm311, %v569, %v487
        %v586 = vand.u32 %v489, 3
        %vm587 = vcmp.eq.s32.totalorder %v586, 1
        %604 = vrot.lane.b32.xlu0 %v570, 127
        %v605 = vpop.permute.xlu0 %604
        %606 = vrot.lane.b32.xlu0 %v571, 127
        %v607 = vpop.permute.xlu0 %606
        %608 = vrot.lane.b32.xlu0 %v572, 127
        %v609 = vpop.permute.xlu0 %608
        %610 = vrot.lane.b32.xlu0 %v573, 127
        %v611 = vpop.permute.xlu0 %610
        %612 = vrot.lane.b32.xlu0 %v574, 127
        %v613 = vpop.permute.xlu0 %612
        %614 = vrot.lane.b32.xlu0 %v575, 127
        %v615 = vpop.permute.xlu0 %614
        %616 = vrot.lane.b32.xlu0 %v576, 127
        %v617 = vpop.permute.xlu0 %616
        %618 = vrot.lane.b32.xlu0 %v577, 127
        %v619 = vpop.permute.xlu0 %618
        %620 = vrot.lane.b32.xlu0 %v578, 127
        %v621 = vpop.permute.xlu0 %620
        %622 = vrot.lane.b32.xlu0 %v579, 127
        %v623 = vpop.permute.xlu0 %622
        %624 = vrot.lane.b32.xlu0 %v580, 127
        %v625 = vpop.permute.xlu0 %624
        %626 = vrot.lane.b32.xlu0 %v581, 127
        %v627 = vpop.permute.xlu0 %626
        %628 = vrot.lane.b32.xlu0 %v582, 127
        %v629 = vpop.permute.xlu0 %628
        %630 = vrot.lane.b32.xlu0 %v583, 127
        %v631 = vpop.permute.xlu0 %630
        %632 = vrot.lane.b32.xlu0 %v584, 127
        %v633 = vpop.permute.xlu0 %632
        %634 = vrot.lane.b32.xlu0 %v585, 127
        %v635 = vpop.permute.xlu0 %634
        %v652 = vsel %vm587, %v605, %v472
        %v653 = vsel %vm587, %v607, %v473
        %v654 = vsel %vm587, %v609, %v474
        %v655 = vsel %vm587, %v611, %v475
        %v656 = vsel %vm587, %v613, %v476
        %v657 = vsel %vm587, %v615, %v477
        %v658 = vsel %vm587, %v617, %v478
        %v659 = vsel %vm587, %v619, %v479
        %v660 = vsel %vm587, %v621, %v480
        %v661 = vsel %vm587, %v623, %v481
        %v662 = vsel %vm587, %v625, %v482
        %v663 = vsel %vm587, %v627, %v483
        %v664 = vsel %vm587, %v629, %v484
        %v665 = vsel %vm587, %v631, %v485
        %v666 = vsel %vm587, %v633, %v486
        %v667 = vsel %vm587, %v635, %v487
        %668 = vrot.lane.b32.xlu0 %v652, 16
        %v669 = vpop.permute.xlu0 %668
        %v670 = vsel %vm311, %v669, %v652
        %671 = vrot.lane.b32.xlu0 %v653, 16
        %v672 = vpop.permute.xlu0 %671
        %v673 = vsel %vm311, %v672, %v653
        %674 = vrot.lane.b32.xlu0 %v654, 16
        %v675 = vpop.permute.xlu0 %674
        %v676 = vsel %vm311, %v675, %v654
        %677 = vrot.lane.b32.xlu0 %v655, 16
        %v678 = vpop.permute.xlu0 %677
        %v679 = vsel %vm311, %v678, %v655
        %680 = vrot.lane.b32.xlu0 %v656, 16
        %v681 = vpop.permute.xlu0 %680
        %v682 = vsel %vm311, %v681, %v656
        %683 = vrot.lane.b32.xlu0 %v657, 16
        %v684 = vpop.permute.xlu0 %683
        %v685 = vsel %vm311, %v684, %v657
        %686 = vrot.lane.b32.xlu0 %v658, 16
        %v687 = vpop.permute.xlu0 %686
        %v688 = vsel %vm311, %v687, %v658
        %689 = vrot.lane.b32.xlu0 %v659, 16
        %v690 = vpop.permute.xlu0 %689
        %v691 = vsel %vm311, %v690, %v659
        %692 = vrot.lane.b32.xlu0 %v660, 16
        %v693 = vpop.permute.xlu0 %692
        %v694 = vsel %vm311, %v693, %v660
        %695 = vrot.lane.b32.xlu0 %v661, 16
        %v696 = vpop.permute.xlu0 %695
        %v697 = vsel %vm311, %v696, %v661
        %698 = vrot.lane.b32.xlu0 %v662, 16
        %v699 = vpop.permute.xlu0 %698
        %v700 = vsel %vm311, %v699, %v662
        %701 = vrot.lane.b32.xlu0 %v663, 16
        %v702 = vpop.permute.xlu0 %701
        %v703 = vsel %vm311, %v702, %v663
        %704 = vrot.lane.b32.xlu0 %v664, 16
        %v705 = vpop.permute.xlu0 %704
        %v706 = vsel %vm311, %v705, %v664
        %707 = vrot.lane.b32.xlu0 %v665, 16
        %v708 = vpop.permute.xlu0 %707
        %v709 = vsel %vm311, %v708, %v665
        %710 = vrot.lane.b32.xlu0 %v666, 16
        %v711 = vpop.permute.xlu0 %710
        %v712 = vsel %vm311, %v711, %v666
        %713 = vrot.lane.b32.xlu0 %v667, 16
        %v714 = vpop.permute.xlu0 %713
        %v715 = vsel %vm311, %v714, %v667
        %716 = vrot.lane.b32.xlu0 %v670, 16
        %v717 = vpop.permute.xlu0 %716
        %718 = vrot.lane.b32.xlu0 %v673, 16
        %v719 = vpop.permute.xlu0 %718
        %720 = vrot.lane.b32.xlu0 %v676, 16
        %v721 = vpop.permute.xlu0 %720
        %722 = vrot.lane.b32.xlu0 %v679, 16
        %v723 = vpop.permute.xlu0 %722
        %724 = vrot.lane.b32.xlu0 %v682, 16
        %v725 = vpop.permute.xlu0 %724
        %726 = vrot.lane.b32.xlu0 %v685, 16
        %v727 = vpop.permute.xlu0 %726
        %728 = vrot.lane.b32.xlu0 %v688, 16
        %v729 = vpop.permute.xlu0 %728
        %730 = vrot.lane.b32.xlu0 %v691, 16
        %v731 = vpop.permute.xlu0 %730
        %732 = vrot.lane.b32.xlu0 %v694, 16
        %v733 = vpop.permute.xlu0 %732
        %734 = vrot.lane.b32.xlu0 %v697, 16
        %v735 = vpop.permute.xlu0 %734
        %736 = vrot.lane.b32.xlu0 %v700, 16
        %v737 = vpop.permute.xlu0 %736
        %738 = vrot.lane.b32.xlu0 %v703, 16
        %v739 = vpop.permute.xlu0 %738
        %740 = vrot.lane.b32.xlu0 %v706, 16
        %v741 = vpop.permute.xlu0 %740
        %742 = vrot.lane.b32.xlu0 %v709, 16
        %v743 = vpop.permute.xlu0 %742
        %744 = vrot.lane.b32.xlu0 %v712, 16
        %v745 = vpop.permute.xlu0 %744
        %746 = vrot.lane.b32.xlu0 %v715, 16
        %v747 = vpop.permute.xlu0 %746
        %v748 = vsel %vm311, %v717, %v652
        %v749 = vsel %vm311, %v719, %v653
        %v750 = vsel %vm311, %v721, %v654
        %v751 = vsel %vm311, %v723, %v655
        %v752 = vsel %vm311, %v725, %v656
        %v753 = vsel %vm311, %v727, %v657
        %v754 = vsel %vm311, %v729, %v658
        %v755 = vsel %vm311, %v731, %v659
        %v756 = vsel %vm311, %v733, %v660
        %v757 = vsel %vm311, %v735, %v661
        %v758 = vsel %vm311, %v737, %v662
        %v759 = vsel %vm311, %v739, %v663
        %v760 = vsel %vm311, %v741, %v664
        %v761 = vsel %vm311, %v743, %v665
        %v762 = vsel %vm311, %v745, %v666
        %v763 = vsel %vm311, %v747, %v667
        %v764 = vshra.s32 %v489, 1
        %v765 = vand.u32 %v764, 3
        %vm766 = vcmp.eq.s32.totalorder %v765, 1
        %783 = vrot.lane.b32.xlu0 %v748, 126
        %v784 = vpop.permute.xlu0 %783
        %785 = vrot.lane.b32.xlu0 %v749, 126
        %v786 = vpop.permute.xlu0 %785
        %787 = vrot.lane.b32.xlu0 %v750, 126
        %v788 = vpop.permute.xlu0 %787
        %789 = vrot.lane.b32.xlu0 %v751, 126
        %v790 = vpop.permute.xlu0 %789
        %791 = vrot.lane.b32.xlu0 %v752, 126
        %v792 = vpop.permute.xlu0 %791
        %793 = vrot.lane.b32.xlu0 %v753, 126
        %v794 = vpop.permute.xlu0 %793
        %795 = vrot.lane.b32.xlu0 %v754, 126
        %v796 = vpop.permute.xlu0 %795
        %797 = vrot.lane.b32.xlu0 %v755, 126
        %v798 = vpop.permute.xlu0 %797
        %799 = vrot.lane.b32.xlu0 %v756, 126
        %v800 = vpop.permute.xlu0 %799
        %801 = vrot.lane.b32.xlu0 %v757, 126
        %v802 = vpop.permute.xlu0 %801
        %803 = vrot.lane.b32.xlu0 %v758, 126
        %v804 = vpop.permute.xlu0 %803
        %805 = vrot.lane.b32.xlu0 %v759, 126
        %v806 = vpop.permute.xlu0 %805
        %807 = vrot.lane.b32.xlu0 %v760, 126
        %v808 = vpop.permute.xlu0 %807
        %809 = vrot.lane.b32.xlu0 %v761, 126
        %v810 = vpop.permute.xlu0 %809
        %811 = vrot.lane.b32.xlu0 %v762, 126
        %v812 = vpop.permute.xlu0 %811
        %813 = vrot.lane.b32.xlu0 %v763, 126
        %v814 = vpop.permute.xlu0 %813
        %v831 = vsel %vm766, %v784, %v652
        %v832 = vsel %vm766, %v786, %v653
        %v833 = vsel %vm766, %v788, %v654
        %v834 = vsel %vm766, %v790, %v655
        %v835 = vsel %vm766, %v792, %v656
        %v836 = vsel %vm766, %v794, %v657
        %v837 = vsel %vm766, %v796, %v658
        %v838 = vsel %vm766, %v798, %v659
        %v839 = vsel %vm766, %v800, %v660
        %v840 = vsel %vm766, %v802, %v661
        %v841 = vsel %vm766, %v804, %v662
        %v842 = vsel %vm766, %v806, %v663
        %v843 = vsel %vm766, %v808, %v664
        %v844 = vsel %vm766, %v810, %v665
        %v845 = vsel %vm766, %v812, %v666
        %v846 = vsel %vm766, %v814, %v667
        %847 = vrot.lane.b32.xlu0 %v831, 16
        %v848 = vpop.permute.xlu0 %847
        %v849 = vsel %vm311, %v848, %v831
        %850 = vrot.lane.b32.xlu0 %v832, 16
        %v851 = vpop.permute.xlu0 %850
        %v852 = vsel %vm311, %v851, %v832
        %853 = vrot.lane.b32.xlu0 %v833, 16
        %v854 = vpop.permute.xlu0 %853
        %v855 = vsel %vm311, %v854, %v833
        %856 = vrot.lane.b32.xlu0 %v834, 16
        %v857 = vpop.permute.xlu0 %856
        %v858 = vsel %vm311, %v857, %v834
        %859 = vrot.lane.b32.xlu0 %v835, 16
        %v860 = vpop.permute.xlu0 %859
        %v861 = vsel %vm311, %v860, %v835
        %862 = vrot.lane.b32.xlu0 %v836, 16
        %v863 = vpop.permute.xlu0 %862
        %v864 = vsel %vm311, %v863, %v836
        %865 = vrot.lane.b32.xlu0 %v837, 16
        %v866 = vpop.permute.xlu0 %865
        %v867 = vsel %vm311, %v866, %v837
        %868 = vrot.lane.b32.xlu0 %v838, 16
        %v869 = vpop.permute.xlu0 %868
        %v870 = vsel %vm311, %v869, %v838
        %871 = vrot.lane.b32.xlu0 %v839, 16
        %v872 = vpop.permute.xlu0 %871
        %v873 = vsel %vm311, %v872, %v839
        %874 = vrot.lane.b32.xlu0 %v840, 16
        %v875 = vpop.permute.xlu0 %874
        %v876 = vsel %vm311, %v875, %v840
        %877 = vrot.lane.b32.xlu0 %v841, 16
        %v878 = vpop.permute.xlu0 %877
        %v879 = vsel %vm311, %v878, %v841
        %880 = vrot.lane.b32.xlu0 %v842, 16
        %v881 = vpop.permute.xlu0 %880
        %v882 = vsel %vm311, %v881, %v842
        %883 = vrot.lane.b32.xlu0 %v843, 16
        %v884 = vpop.permute.xlu0 %883
        %v885 = vsel %vm311, %v884, %v843
        %886 = vrot.lane.b32.xlu0 %v844, 16
        %v887 = vpop.permute.xlu0 %886
        %v888 = vsel %vm311, %v887, %v844
        %889 = vrot.lane.b32.xlu0 %v845, 16
        %v890 = vpop.permute.xlu0 %889
        %v891 = vsel %vm311, %v890, %v845
        %892 = vrot.lane.b32.xlu0 %v846, 16
        %v893 = vpop.permute.xlu0 %892
        %v894 = vsel %vm311, %v893, %v846
        %895 = vrot.lane.b32.xlu0 %v849, 16
        %v896 = vpop.permute.xlu0 %895
        %897 = vrot.lane.b32.xlu0 %v852, 16
        %v898 = vpop.permute.xlu0 %897
        %899 = vrot.lane.b32.xlu0 %v855, 16
        %v900 = vpop.permute.xlu0 %899
        %901 = vrot.lane.b32.xlu0 %v858, 16
        %v902 = vpop.permute.xlu0 %901
        %903 = vrot.lane.b32.xlu0 %v861, 16
        %v904 = vpop.permute.xlu0 %903
        %905 = vrot.lane.b32.xlu0 %v864, 16
        %v906 = vpop.permute.xlu0 %905
        %907 = vrot.lane.b32.xlu0 %v867, 16
        %v908 = vpop.permute.xlu0 %907
        %909 = vrot.lane.b32.xlu0 %v870, 16
        %v910 = vpop.permute.xlu0 %909
        %911 = vrot.lane.b32.xlu0 %v873, 16
        %v912 = vpop.permute.xlu0 %911
        %913 = vrot.lane.b32.xlu0 %v876, 16
        %v914 = vpop.permute.xlu0 %913
        %915 = vrot.lane.b32.xlu0 %v879, 16
        %v916 = vpop.permute.xlu0 %915
        %917 = vrot.lane.b32.xlu0 %v882, 16
        %v918 = vpop.permute.xlu0 %917
        %919 = vrot.lane.b32.xlu0 %v885, 16
        %v920 = vpop.permute.xlu0 %919
        %921 = vrot.lane.b32.xlu0 %v888, 16
        %v922 = vpop.permute.xlu0 %921
        %923 = vrot.lane.b32.xlu0 %v891, 16
        %v924 = vpop.permute.xlu0 %923
        %925 = vrot.lane.b32.xlu0 %v894, 16
        %v926 = vpop.permute.xlu0 %925
        %v927 = vsel %vm311, %v896, %v831
        %v928 = vsel %vm311, %v898, %v832
        %v929 = vsel %vm311, %v900, %v833
        %v930 = vsel %vm311, %v902, %v834
        %v931 = vsel %vm311, %v904, %v835
        %v932 = vsel %vm311, %v906, %v836
        %v933 = vsel %vm311, %v908, %v837
        %v934 = vsel %vm311, %v910, %v838
        %v935 = vsel %vm311, %v912, %v839
        %v936 = vsel %vm311, %v914, %v840
        %v937 = vsel %vm311, %v916, %v841
        %v938 = vsel %vm311, %v918, %v842
        %v939 = vsel %vm311, %v920, %v843
        %v940 = vsel %vm311, %v922, %v844
        %v941 = vsel %vm311, %v924, %v845
        %v942 = vsel %vm311, %v926, %v846
        %v943 = vshra.s32 %v489, 2
        %v944 = vand.u32 %v943, 3
        %vm945 = vcmp.eq.s32.totalorder %v944, 1
        %962 = vrot.lane.b32.xlu0 %v927, 124
        %v963 = vpop.permute.xlu0 %962
        %964 = vrot.lane.b32.xlu0 %v928, 124
        %v965 = vpop.permute.xlu0 %964
        %966 = vrot.lane.b32.xlu0 %v929, 124
        %v967 = vpop.permute.xlu0 %966
        %968 = vrot.lane.b32.xlu0 %v930, 124
        %v969 = vpop.permute.xlu0 %968
        %970 = vrot.lane.b32.xlu0 %v931, 124
        %v971 = vpop.permute.xlu0 %970
        %972 = vrot.lane.b32.xlu0 %v932, 124
        %v973 = vpop.permute.xlu0 %972
        %974 = vrot.lane.b32.xlu0 %v933, 124
        %v975 = vpop.permute.xlu0 %974
        %976 = vrot.lane.b32.xlu0 %v934, 124
        %v977 = vpop.permute.xlu0 %976
        %978 = vrot.lane.b32.xlu0 %v935, 124
        %v979 = vpop.permute.xlu0 %978
        %980 = vrot.lane.b32.xlu0 %v936, 124
        %v981 = vpop.permute.xlu0 %980
        %982 = vrot.lane.b32.xlu0 %v937, 124
        %v983 = vpop.permute.xlu0 %982
        %984 = vrot.lane.b32.xlu0 %v938, 124
        %v985 = vpop.permute.xlu0 %984
        %986 = vrot.lane.b32.xlu0 %v939, 124
        %v987 = vpop.permute.xlu0 %986
        %988 = vrot.lane.b32.xlu0 %v940, 124
        %v989 = vpop.permute.xlu0 %988
        %990 = vrot.lane.b32.xlu0 %v941, 124
        %v991 = vpop.permute.xlu0 %990
        %992 = vrot.lane.b32.xlu0 %v942, 124
        %v993 = vpop.permute.xlu0 %992
        %v1010 = vsel %vm945, %v963, %v831
        %v1011 = vsel %vm945, %v965, %v832
        %v1012 = vsel %vm945, %v967, %v833
        %v1013 = vsel %vm945, %v969, %v834
        %v1014 = vsel %vm945, %v971, %v835
        %v1015 = vsel %vm945, %v973, %v836
        %v1016 = vsel %vm945, %v975, %v837
        %v1017 = vsel %vm945, %v977, %v838
        %v1018 = vsel %vm945, %v979, %v839
        %v1019 = vsel %vm945, %v981, %v840
        %v1020 = vsel %vm945, %v983, %v841
        %v1021 = vsel %vm945, %v985, %v842
        %v1022 = vsel %vm945, %v987, %v843
        %v1023 = vsel %vm945, %v989, %v844
        %v1024 = vsel %vm945, %v991, %v845
        %v1025 = vsel %vm945, %v993, %v846
        %vm1026 = vcmask 64512
        %1027 = vst.msk [vmem:[%s110] sm:$0xff] %vm1026, %v1010
        %1028 = vst.msk [vmem:[%s110 + $0x8] sm:$0xff] %vm1026, %v1011
        %1029 = vst.msk [vmem:[%s110 + $0x10] sm:$0xff] %vm1026, %v1012
        %1030 = vst.msk [vmem:[%s110 + $0x18] sm:$0xff] %vm1026, %v1013
        %1031 = vst.msk [vmem:[%s110 + $0x20] sm:$0xff] %vm1026, %v1014
        %1032 = vst.msk [vmem:[%s110 + $0x28] sm:$0xff] %vm1026, %v1015
        %1033 = vst.msk [vmem:[%s110 + $0x30] sm:$0xff] %vm1026, %v1016
        %1034 = vst.msk [vmem:[%s110 + $0x38] sm:$0xff] %vm1026, %v1017
        %1035 = vst.msk [vmem:[%s110 + $0x40] sm:$0xff] %vm1026, %v1018
        %1036 = vst.msk [vmem:[%s110 + $0x48] sm:$0xff] %vm1026, %v1019
        %1037 = vst.msk [vmem:[%s110 + $0x50] sm:$0xff] %vm1026, %v1020
        %1038 = vst.msk [vmem:[%s110 + $0x58] sm:$0xff] %vm1026, %v1021
        %1039 = vst.msk [vmem:[%s110 + $0x60] sm:$0xff] %vm1026, %v1022
        %1040 = vst.msk [vmem:[%s110 + $0x68] sm:$0xff] %vm1026, %v1023
        %1041 = vst.msk [vmem:[%s110 + $0x70] sm:$0xff] %vm1026, %v1024
        %1042 = vst.msk [vmem:[%s110 + $0x78] sm:$0xff] %vm1026, %v1025
        %s1043 = sand.u32 %s49, 1
        %s1044 = scalar_lea.sflag [#allocation3], %s1043
        %s1045 = sand.u32 %s49, 1
        %s1046 = smul.addr %s1045, 128
        %s1047 = scalar_lea.vmem [#allocation2], %s1046
        // Predicated region
        $region25: #{cube_maxpool2x2.1} parent=23 // pred_check
          %p1048 = pneg %p59
        $region26: #{cube_maxpool2x2.1} parent=23 // pred_check_branch
          %1050 = sbr.rel (%p1048) target = $region28
        $region27: #{cube_maxpool2x2.1} parent=23 // pred_region
          %s1051 = smul.u32 16, %s15
          %1053 = vsyncadd %s1044, 0
          %s1054 = smul.addr %s1051, 8
          %s1055 = scalar_lea.hbm %s1, %s1054
          %s1056 = sshll.u32 %s1047, 4
          %s1057 = int_to_ptr.vmem [resolvable:$true] %s1056
          %s1058 = sshll.u32 %s1055, 4
          %s1059 = int_to_ptr.hbm [resolvable:$true] %s1058
          %1064 = dma.vmem_to_hbm [thread:$0]  %s1057, 2048, %s1059, %s1044, 128, 128, 8
        $region28: #{cube_maxpool2x2.1} parent=23 // pred_fallthru
          _
      $region24: #{cube_maxpool2x2.1} parent=5 // pred_fallthru
        _
      %p1065 = scmp.le.s32.totalorder 2, %s10
      // Predicated region
      $region29: #{cube_maxpool2x2.1} parent=5 // pred_check
        %p1066 = pneg %p1065
      $region30: #{cube_maxpool2x2.1} parent=5 // pred_check_branch
        %1068 = sbr.rel (%p1066) target = $region32
      $region31: #{cube_maxpool2x2.1} parent=5 // pred_region
        %s1069 = ssub.s32 %s10, 2
        // Predicated region
        $region33: #{cube_maxpool2x2.1} parent=31 // pred_check
          %p1070 = pneg %p65
        $region34: #{cube_maxpool2x2.1} parent=31 // pred_check_branch
          %1072 = sbr.rel (%p1070) target = $region36
        $region35: #{cube_maxpool2x2.1} parent=31 // pred_region
          %s1073 = sand.u32 %s50, 1
          %s1074 = scalar_lea.sflag [#allocation3], %s1073
          %s1075 = sand.u32 %s50, 1
          %s1076 = smul.addr %s1075, 128
          %s1077 = scalar_lea.vmem [#allocation2], %s1076
          %1079 = dma.done %s1074, 2048
        $region36: #{cube_maxpool2x2.1} parent=31 // pred_fallthru
          _
      $region32: #{cube_maxpool2x2.1} parent=5 // pred_fallthru
        _
    $region6: #{cube_maxpool2x2.1} parent=1 // loop_footer
      %s14 = sadd.s32 1, %s10
    $region7: #{cube_maxpool2x2.1} parent=1 // loop_footer_branch
      %9 = sbr.rel target = $region3
    $region8: #{cube_maxpool2x2.1} parent=1 // loop_exit
      _
    %1080 = vsyncpa [#allocation3], 1
    %s1081 = scalar_lea.sflag [#allocation3], 1
    %1082 = vsyncpa %s1081, 1

</llo_original>
